<compile_context>
chip_gen: v7x
topology: tpu7x:2x2x1
jax: 0.10.0
libtpu: 0.0.40
codegen_flags: <defaults>
</compile_context>

<pallas_src>
import functools

import jax
import jax.numpy as jnp
from jax import lax
from jax.experimental import pallas as pl
from jax.experimental.pallas import tpu as pltpu


def _vmem_limit_bytes(default=32 * 1024 * 1024):
    """Scoped-VMEM budget ~= half of physical VMEM (64 MiB on v5e/v6e which have
    128 MiB, 32 MiB on v7x which has 64 MiB); conservative fallback otherwise."""
    try:
        info = pltpu.get_tpu_info()
        cap = getattr(info, "vmem_capacity_bytes", None)
        if cap:
            return int(min(cap // 2, 96 * 1024 * 1024))
    except Exception:
        pass
    return default


_VMEM_LIMIT = _vmem_limit_bytes()


def _pick_batch_tile(B, per_b_bytes, budget_bytes):
    """Batch elements per grid step: amortize the ~0.35us/step pipeline overhead
    with a multi-MiB working set, but keep >=2 parallel grid steps when B >= 2
    so both v7x TensorCores get work."""
    bt = max(1, min(B, budget_bytes // max(per_b_bytes, 1)))
    if B >= 2:
        bt = min(bt, -(-B // 2))  # cap at ceil(B/2)
    return int(bt)


def _pick_d_chunk(D, target=128):
    """Largest nice divisor of D (<= target) so the fused pairwise slab
    (d_chunk, TNy) stays register/VMEM friendly."""
    for c in (256, 128, 64, 32, 16, 8):
        if c <= target and c <= D and D % c == 0:
            return c
    return D


# ---------------------------------------------------------------------------
# Kernel 0: coefficients = tanh(A(weights)) for the whole batch.
# One well-shaped (bc, IN) @ (IN, D) matmul per grid step (tanh lands on EUP).
# ---------------------------------------------------------------------------
def _coeff_kernel(w_ref, aw_ref, ab_ref, o_ref):
    o_ref[...] = jnp.tanh(
        jnp.dot(w_ref[...], aw_ref[...], preferred_element_type=jnp.float32)
        + ab_ref[...]
    )


def _coefficients(weights, A_w, A_b):
    B, IN = weights.shape
    D = A_w.shape[1]
    bc = min(B, 1024)
    coeff = pl.pallas_call(
        _coeff_kernel,
        out_shape=jax.ShapeDtypeStruct((B, D), jnp.float32),
        grid_spec=pltpu.PrefetchScalarGridSpec(
            num_scalar_prefetch=0,
            grid=(pl.cdiv(B, bc),),
            in_specs=[
                pl.BlockSpec((bc, IN), lambda i: (i, 0)),
                pl.BlockSpec((IN, D), lambda i: (0, 0)),
                pl.BlockSpec((1, D), lambda i: (0, 0)),
            ],
            out_specs=pl.BlockSpec((bc, D), lambda i: (i, 0)),
        ),
        compiler_params=pltpu.CompilerParams(
            dimension_semantics=("parallel",),
            vmem_limit_bytes=_VMEM_LIMIT,
        ),
    )(weights.astype(jnp.float32), A_w.astype(jnp.float32),
      A_b.reshape(1, D).astype(jnp.float32))
    return coeff.reshape(B, 1, D)  # second-to-last block dim == 1 == full dim


# ---------------------------------------------------------------------------
# Kernel 1: forward (complex=False)
#   res = (X * coeff) @ Y^T == X @ (Y * coeff)^T; the coeff broadcast-multiply is
#   applied to whichever side has fewer rows.  Contraction over D uses the
#   transposed-operand dot_general path (no explicit Y transpose).
# ---------------------------------------------------------------------------
def _simple_affinity_kernel(x_ref, y_ref, c_ref, o_ref, *, scale_x, mxu_dtype):
    if scale_x:
        a = (x_ref[...] * c_ref[...]).astype(mxu_dtype)       # (bt, Nx, D)
        b = y_ref[...].astype(mxu_dtype)                      # (bt, Ny, D)
    else:
        a = x_ref[...].astype(mxu_dtype)
        b = (y_ref[...] * c_ref[...]).astype(mxu_dtype)
    o_ref[...] = lax.dot_general(
        a, b,
        dimension_numbers=(((2,), (2,)), ((0,), (0,))),       # bnd,bmd->bnm
        preferred_element_type=jnp.float32,
    )


def simple_affinity(X, Y, weights, A_w, A_b, *, mxu_dtype=jnp.bfloat16):
    B, Nx, D = X.shape
    Ny = Y.shape[1]
    coeff = _coefficients(weights, A_w, A_b)                  # (B, 1, D)
    scale_x = Nx <= Ny
    per_b = 2 * 4 * (Nx * D + Ny * D + D + Nx * Ny)           # f32, double-buffered
    budget = min(8 * 1024 * 1024, _VMEM_LIMIT // 3)
    bt = _pick_batch_tile(B, per_b, budget)
    kernel = functools.partial(_simple_affinity_kernel, scale_x=scale_x,
                               mxu_dtype=mxu_dtype)
    # TODO(synk): when Ny < 128 output stores are lane-masked (vst.msk); a
    # lane-dense (B, Nx*Ny) layout would need an in-kernel relayout whose
    # lowering is not guaranteed, so it is intentionally not attempted here.
    return pl.pallas_call(
        kernel,
        out_shape=jax.ShapeDtypeStruct((B, Nx, Ny), jnp.float32),
        grid_spec=pltpu.PrefetchScalarGridSpec(
            num_scalar_prefetch=0,
            grid=(pl.cdiv(B, bt),),
            in_specs=[
                pl.BlockSpec((bt, Nx, D), lambda b: (b, 0, 0)),
                pl.BlockSpec((bt, Ny, D), lambda b: (b, 0, 0)),
                pl.BlockSpec((bt, 1, D), lambda b: (b, 0, 0)),
            ],
            out_specs=pl.BlockSpec((bt, Nx, Ny), lambda b: (b, 0, 0)),
        ),
        compiler_params=pltpu.CompilerParams(
            dimension_semantics=("parallel",),
            vmem_limit_bytes=_VMEM_LIMIT,
        ),
    )(X.astype(jnp.float32), Y.astype(jnp.float32), coeff)


# ---------------------------------------------------------------------------
# Kernel 2: forward_complex (eval mode: dropout == identity)
#   complex_lin(cat(Xs, Y)) == Xs @ Wx + Y @ Wy + b2.  Per tile:
#     ybt = Wy^T Y^T + b2                       (D, TNy)   one matmul
#     per row n (fori_loop):
#       xa_col = Wx^T (x_n * coeff)             (D, 1)     matvec, D on sublanes
#       row    = sum over d_chunks of  w3_chunk @ relu(xa_chunk + ybt_chunk)
#                                                (1, TNy)   fused: no (D,TNx,TNy)
#       o[n,:] = row + b3
#   The per-row matvec keeps D on sublanes so the w3-weighted reduction produces
#   a lane-dense output row with no dynamic lane slicing or transposes.
# ---------------------------------------------------------------------------
def _complex_affinity_kernel(x_ref, y_ref, c_ref, wx_ref, wy_ref, b2_ref,
                             w3_ref, b3_ref, o_ref, ybt_ref, *, d_chunk):
    TNx, D = x_ref.shape
    TNy = y_ref.shape[0]
    n_chunks = D // d_chunk

    # Y half of complex_lin, once per tile, with b2 folded in once.
    ybt_ref[...] = lax.dot_general(
        wy_ref[...], y_ref[...].astype(wy_ref.dtype),
        dimension_numbers=(((0,), (1,)), ((), ())),
        preferred_element_type=jnp.float32) + b2_ref[...]      # (D, TNy)

    b3 = b3_ref[0, 0]                                          # scalar (SMEM)
    c_row = c_ref[...]                                         # (1, D) f32

    def n_body(n, carry):
        xs_row = (x_ref[pl.ds(n, 1), :] * c_row).astype(wx_ref.dtype)   # (1, D)
        xa_col = lax.dot_general(
            wx_ref[...], xs_row,
            dimension_numbers=(((0,), (1,)), ((), ())),
            preferred_element_type=jnp.float32)                          # (D, 1)
        row = jnp.zeros((1, TNy), jnp.float32)
        for c in range(n_chunks):                                        # static, small
            lo, hi = c * d_chunk, (c + 1) * d_chunk
            # fused pairwise slab: only (d_chunk, TNy) live, relu on VPU,
            # w3-weighted reduction over d on the (otherwise idle) MXU.
            u = jax.nn.relu(xa_col[lo:hi, :] + ybt_ref[lo:hi, :])        # (dc, TNy)
            row = row + lax.dot_general(
                w3_ref[:, lo:hi], u,
                dimension_numbers=(((1,), (0,)), ((), ())),
                preferred_element_type=jnp.float32)                      # (1, TNy)
        # TODO(synk): nn.Dropout(p=0.3) is identity in eval mode; training-mode
        # stochastic dropout is not implemented here.
        o_ref[pl.ds(n, 1), :] = row + b3
        return carry

    lax.fori_loop(0, TNx, n_body, 0)


def _complex_tiles(Nx, Ny, D, mxu_bytes, limit):
    """Tile Nx/Ny so the double-buffered blocks + resident weights + scratch fit
    the scoped-VMEM budget (fixes the under-counted estimate flagged in review)."""
    TNx = min(Nx, 128)
    TNy = min(Ny, 128)

    def est(tnx, tny):
        blocks = (tnx * D + tny * D + D + tnx * tny) * 4       # x, y, coeff, out (f32)
        blocks += 2 * D * D * mxu_bytes                        # Wx, Wy
        blocks += D * 128 * 4 + D * 4                          # b2 (lane-padded), w3
        return 2 * blocks + D * tny * 4                        # double-buffer + scratch

    while est(TNx, TNy) > limit and TNy > 8:
        TNy = max(8, (TNy // 2) // 8 * 8)
    while est(TNx, TNy) > limit and TNx > 8:
        TNx = max(8, (TNx // 2) // 8 * 8)
    return TNx, TNy


def complex_affinity(X, Y, weights, A_w, A_b, W2, b2, W3, b3,
                     *, mxu_dtype=jnp.bfloat16):
    B, Nx, D = X.shape
    Ny = Y.shape[1]
    coeff = _coefficients(weights, A_w, A_b)                   # (B, 1, D)
    # split complex_lin weight (torch shape (D, 2D)) into X / Y halves, (in,out),
    # pre-cast to the MXU dtype on the host (halves DMA/VMEM on the bf16 path).
    Wx = W2[:, :D].T.astype(mxu_dtype)                         # (D, D)
    Wy = W2[:, D:].T.astype(mxu_dtype)                         # (D, D)
    b2c = b2.reshape(D, 1).astype(jnp.float32)                 # column (D on sublanes)
    w3r = W3.reshape(1, D).astype(jnp.float32)                 # complex_out weight
    b3c = b3.reshape(1, 1).astype(jnp.float32)

    mxu_bytes = jnp.dtype(mxu_dtype).itemsize
    TNx, TNy = _complex_tiles(Nx, Ny, D, mxu_bytes, int(0.8 * _VMEM_LIMIT))
    d_chunk = _pick_d_chunk(D)
    kernel = functools.partial(_complex_affinity_kernel, d_chunk=d_chunk)
    grid = (B, pl.cdiv(Nx, TNx), pl.cdiv(Ny, TNy))
    return pl.pallas_call(
        kernel,
        out_shape=jax.ShapeDtypeStruct((B, Nx, Ny), jnp.float32),
        grid_spec=pltpu.PrefetchScalarGridSpec(
            num_scalar_prefetch=0,
            grid=grid,
            in_specs=[
                pl.BlockSpec((None, TNx, D), lambda b, i, j: (b, i, 0)),   # X
                pl.BlockSpec((None, TNy, D), lambda b, i, j: (b, j, 0)),   # Y
                pl.BlockSpec((None, 1, D), lambda b, i, j: (b, 0, 0)),     # coeff
                pl.BlockSpec((D, D), lambda b, i, j: (0, 0)),              # Wx
                pl.BlockSpec((D, D), lambda b, i, j: (0, 0)),              # Wy
                pl.BlockSpec((D, 1), lambda b, i, j: (0, 0)),              # b2 col
                pl.BlockSpec((1, D), lambda b, i, j: (0, 0)),              # w3 row
                pl.BlockSpec(memory_space=pltpu.MemorySpace.SMEM),         # b3 scalar
            ],
            out_specs=pl.BlockSpec((None, TNx, TNy), lambda b, i, j: (b, i, j)),
            scratch_shapes=[pltpu.VMEM((D, TNy), jnp.float32)],            # ybt
        ),
        compiler_params=pltpu.CompilerParams(
            dimension_semantics=("parallel", "parallel", "parallel"),
            vmem_limit_bytes=_VMEM_LIMIT,
        ),
    )(X.astype(jnp.float32), Y.astype(jnp.float32), coeff,
      Wx, Wy, b2c, w3r, b3c)


# ---------------------------------------------------------------------------
# Pure-JAX references (mirror the torch module, eval mode).  mxu_dtype lets us
# build a cast-matched reference for checking the bf16 MXU-operand path.
# ---------------------------------------------------------------------------
def _reference_simple(X, Y, weights, A_w, A_b, mxu_dtype=jnp.float32):
    Nx, Ny = X.shape[1], Y.shape[1]
    coeff = jnp.tanh(weights @ A_w + A_b)                      # (B, D)
    if Nx <= Ny:
        a = (X * coeff[:, None, :]).astype(mxu_dtype)
        b = Y.astype(mxu_dtype)
    else:
        a = X.astype(mxu_dtype)
        b = (Y * coeff[:, None, :]).astype(mxu_dtype)
    return jnp.einsum("bnd,bmd->bnm", a, b,
                      preferred_element_type=jnp.float32,
                      precision=lax.Precision.HIGHEST)


def _reference_complex(X, Y, weights, A_w, A_b, W2, b2, W3, b3,
                       mxu_dtype=jnp.float32):
    B, Nx, D = X.shape
    coeff = jnp.tanh(weights @ A_w + A_b)
    Xs = X * coeff[:, None, :]
    Wx = W2[:, :D].T
    Wy = W2[:, D:].T
    XA = jnp.einsum("bnd,de->bne", Xs.astype(mxu_dtype), Wx.astype(mxu_dtype),
                    preferred_element_type=jnp.float32,
                    precision=lax.Precision.HIGHEST)
    YB = jnp.einsum("bmd,de->bme", Y.astype(mxu_dtype), Wy.astype(mxu_dtype),
                    preferred_element_type=jnp.float32,
                    precision=lax.Precision.HIGHEST) + b2
    U = jax.nn.relu(XA[:, :, None, :] + YB[:, None, :, :])     # (B, Nx, Ny, D) f32
    # Dropout(p=0.3) is identity in eval mode.
    return jnp.einsum("bnmd,d->bnm", U, W3[0],
                      preferred_element_type=jnp.float32,
                      precision=lax.Precision.HIGHEST) + b3[0]


if __name__ == "__main__":
    B, Nx, Ny = 2, 8, 8
    INPUT_DIM, OUTPUT_DIM = 32, 32

    key = jax.random.PRNGKey(0)
    ks = jax.random.split(key, 10)

    # Inputs
    X = jax.random.normal(ks[0], (B, Nx, OUTPUT_DIM), jnp.float32)
    Y = jax.random.normal(ks[1], (B, Ny, OUTPUT_DIM), jnp.float32)
    weights = jax.random.normal(ks[2], (B, INPUT_DIM), jnp.float32)

    # Parameters (torch Linear shapes; A stored pre-transposed as (in, out))
    A_w = 0.1 * jax.random.normal(ks[3], (INPUT_DIM, OUTPUT_DIM), jnp.float32)
    A_b = 0.1 * jax.random.normal(ks[4], (OUTPUT_DIM,), jnp.float32)
    W2 = 0.1 * jax.random.normal(ks[5], (OUTPUT_DIM, 2 * OUTPUT_DIM), jnp.float32)
    b2 = 0.1 * jax.random.normal(ks[6], (OUTPUT_DIM,), jnp.float32)
    W3 = 0.1 * jax.random.normal(ks[7], (1, OUTPUT_DIM), jnp.float32)
    b3 = 0.1 * jax.random.normal(ks[8], (1,), jnp.float32)

    # ---- simple path (forward, complex=False): f32 MXU operands, tight tol ----
    out_s_f32 = jax.block_until_ready(
        simple_affinity(X, Y, weights, A_w, A_b, mxu_dtype=jnp.float32))
    ref_s = _reference_simple(X, Y, weights, A_w, A_b)
    assert out_s_f32.shape == (B, Nx, Ny)
    assert jnp.allclose(out_s_f32, ref_s, atol=1e-3, rtol=1e-3)

    # ---- simple path: bf16 MXU operands (perf path), cast-matched reference ----
    out_s_bf16 = jax.block_until_ready(
        simple_affinity(X, Y, weights, A_w, A_b, mxu_dtype=jnp.bfloat16))
    ref_s_bf16 = _reference_simple(X, Y, weights, A_w, A_b, mxu_dtype=jnp.bfloat16)
    assert jnp.allclose(out_s_bf16, ref_s_bf16, atol=2e-2, rtol=2e-2)

    # ---- complex path (forward_complex, eval): f32 MXU operands ----
    out_c_f32 = jax.block_until_ready(
        complex_affinity(X, Y, weights, A_w, A_b, W2, b2, W3, b3,
                         mxu_dtype=jnp.float32))
    ref_c = _reference_complex(X, Y, weights, A_w, A_b, W2, b2, W3, b3)
    assert out_c_f32.shape == (B, Nx, Ny)
    assert jnp.allclose(out_c_f32, ref_c, atol=3e-3, rtol=3e-3)

    # ---- complex path: bf16 MXU operands (perf path), cast-matched reference ----
    out_c_bf16 = jax.block_until_ready(
        complex_affinity(X, Y, weights, A_w, A_b, W2, b2, W3, b3,
                         mxu_dtype=jnp.bfloat16))
    ref_c_bf16 = _reference_complex(X, Y, weights, A_w, A_b, W2, b2, W3, b3,
                                    mxu_dtype=jnp.bfloat16)
    assert jnp.allclose(out_c_bf16, ref_c_bf16, atol=2e-2, rtol=2e-2)

    print("KERNEL_OK")
</pallas_src>

<mosaic_0001>
module attributes {stable_mosaic.version = 11 : i64} {
  func.func @_coeff_kernel(%arg0: i32, %arg1: memref<2x32xf32, #tpu.memory_space<vmem>>, %arg2: memref<32x32xf32, #tpu.memory_space<vmem>>, %arg3: memref<1x32xf32, #tpu.memory_space<vmem>>, %arg4: memref<2x32xf32, #tpu.memory_space<vmem>>) attributes {dimension_semantics = [#tpu.dimension_semantics<parallel>], iteration_bounds = array<i64: 1>, scalar_prefetch = 0 : i64, scratch_operands = 0 : i64, tpu.core_type = #tpu.core_type<tc>, window_params = [{transform_indices = @transform_0, window_bounds = array<i64: 2, 32>}, {pipeline_mode = #tpu.pipeline_mode<synchronous>, transform_indices = @transform_1, window_bounds = array<i64: 32, 32>}, {pipeline_mode = #tpu.pipeline_mode<synchronous>, transform_indices = @transform_2, window_bounds = array<i64: 1, 32>}, {transform_indices = @transform_3, window_bounds = array<i64: 2, 32>}]} {
    %c0 = arith.constant 0 : index
    %c0_0 = arith.constant 0 : index
    %0 = vector.load %arg1[%c0, %c0_0] : memref<2x32xf32, #tpu.memory_space<vmem>>, vector<2x32xf32>
    %c0_1 = arith.constant 0 : index
    %c0_2 = arith.constant 0 : index
    %1 = vector.load %arg2[%c0_1, %c0_2] : memref<32x32xf32, #tpu.memory_space<vmem>>, vector<32x32xf32>
    %cst = arith.constant dense<0.000000e+00> : vector<2x32xf32>
    %2 = tpu.matmul %0, %1, %cst {dimension_numbers = #tpu.dot_dimension_numbers<[1], [0], [0], [1], [0, 0, 1, 1], [], []>} : vector<2x32xf32>, vector<32x32xf32>, vector<2x32xf32> -> vector<2x32xf32>
    %c0_3 = arith.constant 0 : index
    %c0_4 = arith.constant 0 : index
    %3 = vector.load %arg3[%c0_3, %c0_4] : memref<1x32xf32, #tpu.memory_space<vmem>>, vector<1x32xf32>
    %4 = vector.broadcast %3 : vector<1x32xf32> to vector<2x32xf32>
    %5 = arith.addf %2, %4 : vector<2x32xf32>
    %6 = math.tanh %5 : vector<2x32xf32>
    %c0_5 = arith.constant 0 : index
    %c0_6 = arith.constant 0 : index
    %7 = vector.load %arg4[%c0_5, %c0_6] : memref<2x32xf32, #tpu.memory_space<vmem>>, vector<2x32xf32>
    tpu.vector_store %arg4[%c0_5, %c0_6], %6 {strides = array<i32>} : memref<2x32xf32, #tpu.memory_space<vmem>>, vector<2x32xf32>,
    return
  }
  func.func @transform_0(%arg0: i32) -> (i32, i32) {
    %c0_i32 = arith.constant 0 : i32
    %c0_i32_0 = arith.constant 0 : i32
    return %arg0, %c0_i32 : i32, i32
  }
  func.func @transform_1(%arg0: i32) -> (i32, i32) {
    %c0_i32 = arith.constant 0 : i32
    %c0_i32_0 = arith.constant 0 : i32
    %c0_i32_1 = arith.constant 0 : i32
    return %c0_i32, %c0_i32_0 : i32, i32
  }
  func.func @transform_2(%arg0: i32) -> (i32, i32) {
    %c0_i32 = arith.constant 0 : i32
    %c0_i32_0 = arith.constant 0 : i32
    %c0_i32_1 = arith.constant 0 : i32
    return %c0_i32, %c0_i32_0 : i32, i32
  }
  func.func @transform_3(%arg0: i32) -> (i32, i32) {
    %c0_i32 = arith.constant 0 : i32
    %c0_i32_0 = arith.constant 0 : i32
    return %arg0, %c0_i32 : i32, i32
  }
}

</mosaic_0001>

<llo_original>
// kernel: tpu_custom_call.1
$region0: #{tpu_custom_call.1}
  #allocation0 [shape = 'u32[]', space=smem, size = 0x4, offset = 0x4, fixed_abs, tag = 'smem constant byte address 0x4 - core index']
  #allocation1 [shape = 'u32[144,128]{1,0:T(1,128)}', space=vmem, size = 0x12000, scoped, tag = 'internal scratch']
  %s0 = inlined_call_operand.hbm [shape: f32[2,32], index: 0, kind: input, shape index: {}]
  %s1 = inlined_call_operand.hbm [shape: f32[32,32], index: 1, kind: input, shape index: {}]
  %s2 = inlined_call_operand.vmem [shape: f32[1,32], index: 2, kind: input, shape index: {}]
  %s3 = inlined_call_operand.hbm [shape: f32[2,32], index: 3, kind: output, shape index: {}]
  %s4 = sld [smem:[#allocation0]]
  $region30: #{tpu_custom_call.1} parent=0
    _
  %s6 = ssub.s32 1, %s4
  %s7 = scalar_select 0, %s6, %s4
  $region1: #{tpu_custom_call.1} parent=0
    #allocation2 [shape = 'u8[1024]{0}', space=vmem, size = 0x400, scoped, tag = 'input window, operand 0, single buffered']
    #allocation3 [shape = 's32[1]{0}', space=sflag, size = 0x4, scoped, tag = 'scoped memory for tpu_custom_call.1']
    #allocation4 [shape = 's32[1]{0}', space=sflag, size = 0x4, scoped, tag = 'scoped memory for tpu_custom_call.1']
    #allocation5 [shape = 'u8[16384]{0}', space=vmem, size = 0x4000, scoped, tag = 'input window, operand 1, single buffered']
    #allocation6 [shape = 's32[1]{0}', space=sflag, size = 0x4, scoped, tag = 'scoped memory for tpu_custom_call.1']
    #allocation7 [shape = 'u8[1024]{0}', space=vmem, size = 0x400, scoped, tag = 'output window, operand 0, single buffered']
    %8 = vsyncpa [#allocation3], 0
    %9 = vsyncpa [#allocation6], 0
    %10 = vsyncpa [#allocation4], 0
    // Predicated region
    $region2: #{tpu_custom_call.1} parent=1 // pred_check
      _
    $region3: #{tpu_custom_call.1} parent=1 // pred_check_branch
      %12 = sbr.rel (0) target = $region5
    $region4: #{tpu_custom_call.1} parent=1 // pred_region
      %s14 = ssub.s32 32, 32
      %15 = vsyncadd [#allocation3], %s14
      %s17 = sshll.u32 [#allocation2], 4
      %s18 = int_to_ptr.vmem [resolvable:$true] %s17
      %20 = dma.hbm_to_vmem [thread:$0]  %s0, 32, %s18, [#allocation3]
    $region5: #{tpu_custom_call.1} parent=1 // pred_fallthru
      _
    // Predicated region
    $region6: #{tpu_custom_call.1} parent=1 // pred_check
      _
    $region7: #{tpu_custom_call.1} parent=1 // pred_check_branch
      %22 = sbr.rel (0) target = $region9
    $region8: #{tpu_custom_call.1} parent=1 // pred_region
      %s24 = ssub.s32 512, 512
      %25 = vsyncadd [#allocation6], %s24
      %s26 = sshll.u32 [#allocation5], 4
      %s27 = int_to_ptr.vmem [resolvable:$true] %s26
      %32 = dma.hbm_to_vmem [thread:$0]  %s1, 512, %s27, [#allocation6], 128, 128, 8
    $region9: #{tpu_custom_call.1} parent=1 // pred_fallthru
      _
    // Predicated region
    $region10: #{tpu_custom_call.1} parent=1 // pred_check
      _
    $region11: #{tpu_custom_call.1} parent=1 // pred_check_branch
      %34 = sbr.rel (0) target = $region13
    $region12: #{tpu_custom_call.1} parent=1 // pred_region
      _
    $region13: #{tpu_custom_call.1} parent=1 // pred_fallthru
      _
    // Predicated region
    $region14: #{tpu_custom_call.1} parent=1 // pred_check
      _
    $region15: #{tpu_custom_call.1} parent=1 // pred_check_branch
      %36 = sbr.rel (0) target = $region17
    $region16: #{tpu_custom_call.1} parent=1 // pred_region
      %37 = dma.done [#allocation3], 32
    $region17: #{tpu_custom_call.1} parent=1 // pred_fallthru
      _
    // Predicated region
    $region18: #{tpu_custom_call.1} parent=1 // pred_check
      _
    $region19: #{tpu_custom_call.1} parent=1 // pred_check_branch
      %39 = sbr.rel (0) target = $region21
    $region20: #{tpu_custom_call.1} parent=1 // pred_region
      %40 = dma.done [#allocation6], 512
    $region21: #{tpu_custom_call.1} parent=1 // pred_fallthru
      _
    %v41 = vld [vmem:[#allocation2] sm:$0x3]
    %v42 = vld [vmem:[#allocation5] sm:$0xff]
    %v43 = vld [vmem:[#allocation5 + $0x8] sm:$0xff]
    %v44 = vld [vmem:[#allocation5 + $0x10] sm:$0xff]
    %v45 = vld [vmem:[#allocation5 + $0x18] sm:$0xff]
    %v46 = vld [vmem:[%s2] sm:$0x1]
    %v48 = vlaneseq
    %v49 = vshrl.u32 %v48, 7
    %v50 = vsub.s32 0, %v49
    %v51 = vrot.slane %v46, %v50
    %vm53 = vcmask 261120
    %v55 = vsel %vm53, %v41, 0
    %57 = vmatprep.subr.mxu0 0.0
    %58 = vmatpush1.msra.mxu0 %v42
    %59 = vmatprep.subr.mxu0 0.0
    %60 = vmatpush1.msra.mxu0 %v43
    %61 = vmatprep.subr.mxu0 0.0
    %62 = vmatpush1.msra.mxu0 %v44
    %63 = vmatprep.subr.mxu0 0.0
    %64 = vmatpush1.msra.mxu0 %v45
    %65 = vmatprep.subr.mxu0 0.0
    %66 = vmatpush1.msra.mxu0 0.0
    %67 = vmatprep.subr.mxu0 0.0
    %68 = vmatpush1.msra.mxu0 0.0
    %69 = vmatprep.subr.mxu0 0.0
    %70 = vmatpush1.msra.mxu0 0.0
    %71 = vmatprep.subr.mxu0 0.0
    %72 = vmatpush1.msra.mxu0 0.0
    %73 = vmatprep.subr.mxu0 0.0
    %74 = vmatpush1.msra.mxu0 0.0
    %75 = vmatprep.subr.mxu0 0.0
    %76 = vmatpush1.msra.mxu0 0.0
    %77 = vmatprep.subr.mxu0 0.0
    %78 = vmatpush1.msra.mxu0 0.0
    %79 = vmatprep.subr.mxu0 0.0
    %80 = vmatpush1.msra.mxu0 0.0
    %81 = vmatprep.subr.mxu0 0.0
    %82 = vmatpush1.msra.mxu0 0.0
    %83 = vmatprep.subr.mxu0 0.0
    %84 = vmatpush1.msra.mxu0 0.0
    %85 = vmatprep.subr.mxu0 0.0
    %86 = vmatpush1.msra.mxu0 0.0
    %87 = vmatprep.subr.mxu0 0.0
    %88 = vmatpush1.msra.mxu0 0.0
    %89 = vmatprep.subr.mxu0 0.0
    %90 = vmatpush1.msra.mxu0 0.0
    %91 = vmatprep.subr.mxu0 0.0
    %92 = vmatpush1.msra.mxu0 0.0
    %93 = vmatprep.subr.mxu0 0.0
    %94 = vmatpush1.msra.mxu0 0.0
    %95 = vmatprep.subr.mxu0 0.0
    %96 = vmatpush1.msra.mxu0 0.0
    %97 = vmatprep.subr.mxu0 0.0
    %98 = vmatpush1.msra.mxu0 0.0
    %99 = vmatprep.subr.mxu0 0.0
    %100 = vmatpush1.msra.mxu0 0.0
    %101 = vmatprep.subr.mxu0 0.0
    %102 = vmatpush1.msra.mxu0 0.0
    %103 = vmatprep.subr.mxu0 0.0
    %104 = vmatpush1.msra.mxu0 0.0
    %105 = vmatprep.subr.mxu0 0.0
    %106 = vmatpush1.msra.mxu0 0.0
    %107 = vmatprep.subr.mxu0 0.0
    %108 = vmatpush1.msra.mxu0 0.0
    %109 = vmatprep.subr.mxu0 0.0
    %110 = vmatpush1.msra.mxu0 0.0
    %111 = vmatprep.subr.mxu0 0.0
    %112 = vmatpush1.msra.mxu0 0.0
    %113 = vmatprep.subr.mxu0 0.0
    %114 = vmatpush1.msra.mxu0 0.0
    %115 = vmatprep.subr.mxu0 0.0
    %116 = vmatpush1.msra.mxu0 0.0
    %117 = vmatprep.subr.mxu0 0.0
    %118 = vmatpush1.msra.mxu0 0.0
    %119 = vmatprep.subr.mxu0 0.0
    %120 = vmatpush1.msra.mxu0 0.0
    %121 = vmatprep.mubr.f32.mxu0 0.0
    %122 = vmatmul.mubr.f32.gmra.mrb[0].mxu0 %v55
    %v123 = vpop.f32.mrb[0].mxu0
    %v124 = vadd.f32 %v51, %v123
    %v125 = vpop.f32.mrb[0].mxu0
    %126 = vdwg.mxu0
    %v127 = vtanh.pop %v124
    %vm128 = vcmask 254976
    %129 = vst.msk [vmem:[#allocation7] sm:$0x3] %vm128, %v127
    // Predicated region
    $region22: #{tpu_custom_call.1} parent=1 // pred_check
      _
    $region23: #{tpu_custom_call.1} parent=1 // pred_check_branch
      %131 = sbr.rel (0) target = $region25
    $region24: #{tpu_custom_call.1} parent=1 // pred_region
      %s133 = ssub.s32 32, 32
      %134 = vsyncadd [#allocation4], %s133
      %s136 = sshll.u32 [#allocation7], 4
      %s137 = int_to_ptr.vmem [resolvable:$true] %s136
      %139 = dma.vmem_to_hbm [thread:$0]  %s137, 32, %s3, [#allocation4]
    $region25: #{tpu_custom_call.1} parent=1 // pred_fallthru
      _
    // Predicated region
    $region26: #{tpu_custom_call.1} parent=1 // pred_check
      _
    $region27: #{tpu_custom_call.1} parent=1 // pred_check_branch
      %141 = sbr.rel (0) target = $region29
    $region28: #{tpu_custom_call.1} parent=1 // pred_region
      %142 = dma.done [#allocation4], 32
    $region29: #{tpu_custom_call.1} parent=1 // pred_fallthru
      _
    %143 = vsyncpa [#allocation3], 1
    %144 = vsyncpa [#allocation6], 1
    %145 = vsyncpa [#allocation4], 1

</llo_original>
